<compile_context>
chip_gen: v7x
topology: tpu7x:2x2x1
jax: 0.10.0
libtpu: 0.0.40
codegen_flags: <defaults>
</compile_context>

<pallas_src>
import jax
import jax.numpy as jnp
from jax import lax
from jax.experimental import pallas as pl
from jax.experimental.pallas import tpu as pltpu

_VMEM_BUDGET = 32 * 1024 * 1024        # tile-sizing budget (fits all chip gens)
_VMEM_LIMIT_BYTES = 48 * 1024 * 1024   # scoped limit: below v7x's 64 MiB physical


def _round_up(x, m):
    return ((x + m - 1) // m) * m


# ----------------------------- Pallas kernels ------------------------------ #

def _conv_matmul_kernel(p_ref, w_ref, b_ref, o_ref, acc_ref):
    """(TM, TK) x (TK, Cout) MXU step, accumulated over the (innermost) K axis."""
    k = pl.program_id(1)

    @pl.when(k == 0)
    def _init():
        acc_ref[...] = jnp.zeros_like(acc_ref)

    acc_ref[...] += jnp.dot(p_ref[...], w_ref[...],
                            preferred_element_type=jnp.float32)

    @pl.when(k == pl.num_programs(1) - 1)
    def _finalize():
        # Bias add rides free VPU slack in the epilogue.
        o_ref[...] = (acc_ref[...] + b_ref[...].astype(jnp.float32)).astype(o_ref.dtype)


def _avgpool_kernel(x_ref, o_ref):
    """x_ref: (TR, 2*Hd, Wd) natural-layout rows (one output-depth slab per r).

    Rows [0, Hd) are depth-tap 0, rows [Hd, 2Hd) are depth-tap 1.  H/W pooling
    is done with batched matmuls against constant 0/1 pairing matrices so the
    kernel never needs lane-splitting reshapes or strided lane slices.
    """
    tr = x_ref.shape[0]
    hd = x_ref.shape[1] // 2
    wd = x_ref.shape[2]
    ho, wo = o_ref.shape[1], o_ref.shape[2]

    # Depth-tap sum via contiguous sublane slices of the ref.
    xd = (x_ref[:, :hd, :].astype(jnp.float32)
          + x_ref[:, hd:, :].astype(jnp.float32))                     # (tr, hd, wd)

    # Constant pairing matrices (VPU iota work, hidden under the input DMA).
    pw = (lax.broadcasted_iota(jnp.int32, (wd, wo), 0) // 2
          == lax.broadcasted_iota(jnp.int32, (wd, wo), 1)).astype(jnp.float32)
    ph = ((lax.broadcasted_iota(jnp.int32, (ho, hd), 1) // 2
           == lax.broadcasted_iota(jnp.int32, (ho, hd), 0)).astype(jnp.float32)
          * 0.125)                                                    # fold 1/8

    # W-pair then H-pair, both as canonical batched MXU matmuls.
    yw = jnp.einsum("rhw,rwk->rhk", xd, jnp.broadcast_to(pw, (tr, wd, wo)),
                    preferred_element_type=jnp.float32)               # (tr, hd, wo)
    y = jnp.einsum("rgh,rhk->rgk", jnp.broadcast_to(ph, (tr, ho, hd)), yw,
                   preferred_element_type=jnp.float32)                # (tr, ho, wo)
    o_ref[...] = y.astype(o_ref.dtype)


# ------------------------------ JAX glue ----------------------------------- #

def _im2col_3d(x, k, stride, pad):
    """x: (N, C, D, H, W) -> patches (N*Do*Ho*Wo, C*k^3); K order: c-major, taps minor."""
    N, C, D, H, W = x.shape
    xp = jnp.pad(x, ((0, 0), (0, 0), (pad, pad), (pad, pad), (pad, pad)))
    Do = (D + 2 * pad - k) // stride + 1
    Ho = (H + 2 * pad - k) // stride + 1
    Wo = (W + 2 * pad - k) // stride + 1
    cols = []
    for kd in range(k):
        for kh in range(k):
            for kw in range(k):
                cols.append(xp[:, :,
                               kd:kd + stride * (Do - 1) + 1:stride,
                               kh:kh + stride * (Ho - 1) + 1:stride,
                               kw:kw + stride * (Wo - 1) + 1:stride])
    p = jnp.stack(cols, axis=2)              # (N, C, k^3, Do, Ho, Wo)
    p = p.transpose(0, 3, 4, 5, 1, 2)        # (N, Do, Ho, Wo, C, k^3)
    return p.reshape(N * Do * Ho * Wo, C * k * k * k), (Do, Ho, Wo)


def _pick_conv_tiles(M, K, Cout, itemsize):
    """Pick (TM, TK, Kp).  Prefer the full (K, Cout) weight VMEM-resident."""
    cout_v = _round_up(Cout, 128)            # VMEM lane padding for the estimate

    def footprint(tm, tk, streamed_w):
        return (2 * tm * tk * itemsize                               # patches, 2 bufs
                + (2 if streamed_w else 1) * tk * cout_v * itemsize  # weight
                + 2 * tm * cout_v * itemsize                         # output, 2 bufs
                + tm * cout_v * 4                                    # f32 accumulator
                + 2 * cout_v * itemsize)                             # bias

    if M < 128:
        tm_opts = (max(16, _round_up(M, 16)),)
    else:
        tm_opts = tuple(t for t in (1024, 512, 256, 128) if t <= max(128, M)) or (128,)

    for tm in tm_opts:                       # largest MXU-aligned TM with resident weight
        if footprint(tm, K, False) <= _VMEM_BUDGET:
            return tm, K, K
    # Rare fallback (very large C*Cout): stream the weight in K slabs.
    tm = tm_opts[-1]
    tk = 2048
    while tk > 256 and footprint(tm, tk, True) > _VMEM_BUDGET:
        tk //= 2
    return tm, tk, _round_up(K, tk)


def conv3d_stride2_pallas(x, w2, bias, padding):
    """Conv3d(kernel=3, stride=2, padding) via an im2col Pallas matmul.

    w2:   (Cin*27, Cout) pre-transposed weight (K order: cin-major, taps minor).
    bias: (Cout,)
    """
    N, C, D, H, W = x.shape
    K, Cout = w2.shape
    assert K == C * 27

    # TODO(synk): im2col patches are still materialized by XLA (~3.4x the input);
    # fusing patch extraction into the kernel needs per-tap strided DMAs.
    patches, (Do, Ho, Wo) = _im2col_3d(x, k=3, stride=2, pad=padding)
    M = patches.shape[0]
    itemsize = jnp.dtype(x.dtype).itemsize

    TM, TK, Kp = _pick_conv_tiles(M, K, Cout, itemsize)
    if Kp != K:
        # Zero-pad only in the (rare) K-streamed fallback; reduction axis needs zeros.
        patches = jnp.pad(patches, ((0, 0), (0, Kp - K)))
        w2 = jnp.pad(w2, ((0, Kp - K), (0, 0)))

    bias2 = bias.reshape(1, Cout)
    cost = pl.CostEstimate(
        flops=2 * M * K * Cout,
        transcendentals=0,
        bytes_accessed=(M * K + K * Cout + Cout + M * Cout) * itemsize,
    )

    out = pl.pallas_call(
        _conv_matmul_kernel,
        out_shape=jax.ShapeDtypeStruct((M, Cout), x.dtype),
        grid=(pl.cdiv(M, TM), Kp // TK),                   # K axis last (reduction)
        in_specs=[
            pl.BlockSpec((TM, TK), lambda i, k: (i, k)),   # patches tile
            pl.BlockSpec((TK, Cout), lambda i, k: (k, 0)), # weight: resident when TK==K
            pl.BlockSpec((1, Cout), lambda i, k: (0, 0)),  # bias (resident)
        ],
        out_specs=pl.BlockSpec((TM, Cout), lambda i, k: (i, 0)),
        scratch_shapes=[pltpu.VMEM((TM, Cout), jnp.float32)],
        compiler_params=pltpu.CompilerParams(
            dimension_semantics=("parallel", "arbitrary"),
            vmem_limit_bytes=_VMEM_LIMIT_BYTES),
        cost_estimate=cost,
    )(patches, w2, bias2)

    out = out.reshape(N, Do, Ho, Wo, Cout).transpose(0, 4, 1, 2, 3)
    return out  # (N, Cout, Do, Ho, Wo)


def avgpool3d_stride2_pallas(x):
    """AvgPool3d(kernel=2, stride=2) fed in natural layout (no host relayout pass)."""
    N, C, D, H, W = x.shape
    Do, Ho, Wo = D // 2, H // 2, W // 2
    if (D, H, W) != (2 * Do, 2 * Ho, 2 * Wo):
        # PyTorch AvgPool3d floors odd spatial dims.
        x = x[:, :, :2 * Do, :2 * Ho, :2 * Wo]

    R = N * C * Do
    Hd, Wd = 2 * Ho, 2 * Wo
    # Pure (contiguous) reshape: rows ordered (n, c, do); per row the two depth
    # taps are stacked along the sublane dim.  No data movement.
    xv = x.reshape(R, 2 * Hd, Wd)

    itemsize = jnp.dtype(x.dtype).itemsize
    per_row = (2 * 2 * Hd * Wd * itemsize           # input block, double-buffered
               + 2 * Ho * Wo * itemsize             # output block, double-buffered
               + (Wd * Wo + Ho * Hd) * 4            # broadcast pooling matrices
               + (Hd * Wd + Hd * Wo + Ho * Wo) * 4) # f32 intermediates
    # Cap TR to bound the in-kernel batched-matmul unroll / broadcast size.
    TR = int(max(1, min(R, 256, _VMEM_BUDGET // max(per_row, 1))))

    out = pl.pallas_call(
        _avgpool_kernel,
        out_shape=jax.ShapeDtypeStruct((R, Ho, Wo), x.dtype),
        grid=(pl.cdiv(R, TR),),
        in_specs=[pl.BlockSpec((TR, 2 * Hd, Wd), lambda i: (i, 0, 0))],
        out_specs=pl.BlockSpec((TR, Ho, Wo), lambda i: (i, 0, 0)),
        compiler_params=pltpu.CompilerParams(
            dimension_semantics=("parallel",),
            vmem_limit_bytes=_VMEM_LIMIT_BYTES),
    )(xv)

    return out.reshape(N, C, Do, Ho, Wo)


# ------------------------------ Module port -------------------------------- #

class Downsample3D:
    """JAX/Pallas port of diffusion3d Downsample3D (stride-2 conv or avg pool)."""

    def __init__(self, channels, use_conv=False, out_channels=None, padding=1,
                 name="conv", *, key=None, dtype=jnp.float32):
        self.channels = channels
        self.out_channels = out_channels or channels
        self.use_conv = use_conv
        self.padding = padding
        self.name = name
        if use_conv:
            key = jax.random.PRNGKey(0) if key is None else key
            kw, kb = jax.random.split(key)
            fan_in = channels * 3 * 3 * 3
            bound = 1.0 / (fan_in ** 0.5)
            # Deterministic init mimicking nn.Conv3d default uniform(-1/sqrt(fan_in), +).
            self.weight = jax.random.uniform(
                kw, (self.out_channels, channels, 3, 3, 3), dtype, -bound, bound)
            self.bias = jax.random.uniform(
                kb, (self.out_channels,), dtype, -bound, bound)
            # Matmul-layout weight computed once at init (no per-call HBM transpose).
            self.w2 = self.weight.reshape(self.out_channels, channels * 27).T
        else:
            assert channels == self.out_channels
            self.weight = None
            self.bias = None
            self.w2 = None

    def __call__(self, hidden_states, scale: float = 1.0):
        assert hidden_states.shape[1] == self.channels
        # `scale` only scales LoRA deltas in LoRACompatibleConv3d; no LoRA layer in
        # this synthetic init, so the base conv ignores it (matches torch behavior).
        if self.use_conv and self.padding == 0:
            # F.pad(x, (0,1,0,1,0,1)): pad W, H, D each by 1 on the high side.
            hidden_states = jnp.pad(
                hidden_states, ((0, 0), (0, 0), (0, 1), (0, 1), (0, 1)))
        if self.use_conv:
            return conv3d_stride2_pallas(hidden_states, self.w2, self.bias,
                                         self.padding)
        return avgpool3d_stride2_pallas(hidden_states)


# --------------------------------- main ------------------------------------ #

if __name__ == "__main__":
    key = jax.random.PRNGKey(0)
    kx, kp, kp0, kx2 = jax.random.split(key, 4)
    N, C, D, H, W = 2, 4, 8, 8, 8
    x = jax.random.normal(kx, (N, C, D, H, W), jnp.float32)

    # --- use_conv=True, padding=1 (Conv3d k=3, stride=2, padding=1) ---
    conv_mod = Downsample3D(channels=C, use_conv=True, out_channels=8, padding=1, key=kp)
    y_conv = jax.block_until_ready(conv_mod(x))
    ref_conv = lax.conv_general_dilated(
        x, conv_mod.weight, window_strides=(2, 2, 2), padding=[(1, 1)] * 3,
        dimension_numbers=("NCDHW", "OIDHW", "NCDHW"),
        precision=lax.Precision.HIGHEST,
    ) + conv_mod.bias.reshape(1, -1, 1, 1, 1)
    assert y_conv.shape == (N, 8, D // 2, H // 2, W // 2), y_conv.shape
    assert jnp.allclose(y_conv, ref_conv, atol=1e-3, rtol=1e-3)

    # --- use_conv=True, padding=0 (module pads high side, then conv pad=0) ---
    conv_mod0 = Downsample3D(channels=C, use_conv=True, out_channels=8, padding=0, key=kp0)
    y_conv0 = jax.block_until_ready(conv_mod0(x))
    ref_conv0 = lax.conv_general_dilated(
        x, conv_mod0.weight, window_strides=(2, 2, 2), padding=[(0, 1)] * 3,
        dimension_numbers=("NCDHW", "OIDHW", "NCDHW"),
        precision=lax.Precision.HIGHEST,
    ) + conv_mod0.bias.reshape(1, -1, 1, 1, 1)
    assert y_conv0.shape == (N, 8, D // 2, H // 2, W // 2), y_conv0.shape
    assert jnp.allclose(y_conv0, ref_conv0, atol=1e-3, rtol=1e-3)

    # --- use_conv=False path (AvgPool3d kernel=2, stride=2), even dims ---
    pool_mod = Downsample3D(channels=C, use_conv=False)
    y_pool = jax.block_until_ready(pool_mod(x))
    ref_pool = lax.reduce_window(
        x, 0.0, lax.add, (1, 1, 2, 2, 2), (1, 1, 2, 2, 2), "VALID") / 8.0
    assert y_pool.shape == (N, C, D // 2, H // 2, W // 2), y_pool.shape
    assert jnp.allclose(y_pool, ref_pool, atol=1e-5, rtol=1e-5)

    # --- use_conv=False path with odd spatial dims (torch floors them) ---
    x_odd = jax.random.normal(kx2, (N, C, 7, 6, 5), jnp.float32)
    y_pool_odd = jax.block_until_ready(pool_mod(x_odd))
    ref_pool_odd = lax.reduce_window(
        x_odd, 0.0, lax.add, (1, 1, 2, 2, 2), (1, 1, 2, 2, 2), "VALID") / 8.0
    assert y_pool_odd.shape == (N, C, 3, 3, 2), y_pool_odd.shape
    assert jnp.allclose(y_pool_odd, ref_pool_odd, atol=1e-5, rtol=1e-5)

    print("KERNEL_OK")
</pallas_src>

<mosaic_0001>
module attributes {stable_mosaic.version = 11 : i64} {
  func.func @_conv_matmul_kernel(%arg0: i32, %arg1: i32, %arg2: memref<128x108xf32, #tpu.memory_space<vmem>>, %arg3: memref<108x8xf32, #tpu.memory_space<vmem>>, %arg4: memref<1x8xf32, #tpu.memory_space<vmem>>, %arg5: memref<128x8xf32, #tpu.memory_space<vmem>>, %arg6: memref<128x8xf32, #tpu.memory_space<vmem>>) attributes {dimension_semantics = [#tpu.dimension_semantics<parallel>, #tpu.dimension_semantics<arbitrary>], iteration_bounds = array<i64: 1, 1>, scalar_prefetch = 0 : i64, scratch_operands = 1 : i64, tpu.core_type = #tpu.core_type<tc>, window_params = [{transform_indices = @transform_0, window_bounds = array<i64: 128, 108>}, {transform_indices = @transform_1, window_bounds = array<i64: 108, 8>}, {pipeline_mode = #tpu.pipeline_mode<synchronous>, transform_indices = @transform_2, window_bounds = array<i64: 1, 8>}, {transform_indices = @transform_3, window_bounds = array<i64: 128, 8>}]} {
    %c0_i32 = arith.constant 0 : i32
    %0 = arith.cmpi eq, %arg1, %c0_i32 : i32
    %1 = arith.extui %0 : i1 to i32
    %c0_i32_0 = arith.constant 0 : i32
    %2 = arith.cmpi ne, %1, %c0_i32_0 : i32
    scf.if %2 {
      %cst_10 = arith.constant 0.000000e+00 : f32
      %12 = vector.broadcast %cst_10 : f32 to vector<128x8xf32>
      %c0_11 = arith.constant 0 : index
      %c0_12 = arith.constant 0 : index
      %13 = vector.load %arg6[%c0_11, %c0_12] : memref<128x8xf32, #tpu.memory_space<vmem>>, vector<128x8xf32>
      tpu.vector_store %arg6[%c0_11, %c0_12], %12 {strides = array<i32>} : memref<128x8xf32, #tpu.memory_space<vmem>>, vector<128x8xf32>,
    } else {
    }
    %c0 = arith.constant 0 : index
    %c0_1 = arith.constant 0 : index
    %3 = vector.load %arg6[%c0, %c0_1] : memref<128x8xf32, #tpu.memory_space<vmem>>, vector<128x8xf32>
    %c0_2 = arith.constant 0 : index
    %c0_3 = arith.constant 0 : index
    %4 = vector.load %arg2[%c0_2, %c0_3] : memref<128x108xf32, #tpu.memory_space<vmem>>, vector<128x108xf32>
    %c0_4 = arith.constant 0 : index
    %c0_5 = arith.constant 0 : index
    %5 = vector.load %arg3[%c0_4, %c0_5] : memref<108x8xf32, #tpu.memory_space<vmem>>, vector<108x8xf32>
    %cst = arith.constant dense<0.000000e+00> : vector<128x8xf32>
    %6 = tpu.matmul %4, %5, %cst {dimension_numbers = #tpu.dot_dimension_numbers<[1], [0], [0], [1], [0, 0, 1, 1], [], []>} : vector<128x108xf32>, vector<108x8xf32>, vector<128x8xf32> -> vector<128x8xf32>
    %7 = arith.addf %3, %6 : vector<128x8xf32>
    %c0_6 = arith.constant 0 : index
    %c0_7 = arith.constant 0 : index
    %8 = vector.load %arg6[%c0_6, %c0_7] : memref<128x8xf32, #tpu.memory_space<vmem>>, vector<128x8xf32>
    tpu.vector_store %arg6[%c0_6, %c0_7], %7 {strides = array<i32>} : memref<128x8xf32, #tpu.memory_space<vmem>>, vector<128x8xf32>,
    %c0_i32_8 = arith.constant 0 : i32
    %9 = arith.cmpi eq, %arg1, %c0_i32_8 : i32
    %10 = arith.extui %9 : i1 to i32
    %c0_i32_9 = arith.constant 0 : i32
    %11 = arith.cmpi ne, %10, %c0_i32_9 : i32
    scf.if %11 {
      %c0_10 = arith.constant 0 : index
      %c0_11 = arith.constant 0 : index
      %12 = vector.load %arg6[%c0_10, %c0_11] : memref<128x8xf32, #tpu.memory_space<vmem>>, vector<128x8xf32>
      %c0_12 = arith.constant 0 : index
      %c0_13 = arith.constant 0 : index
      %13 = vector.load %arg4[%c0_12, %c0_13] : memref<1x8xf32, #tpu.memory_space<vmem>>, vector<1x8xf32>
      %14 = vector.broadcast %13 : vector<1x8xf32> to vector<128x8xf32>
      %15 = arith.addf %12, %14 : vector<128x8xf32>
      %c0_14 = arith.constant 0 : index
      %c0_15 = arith.constant 0 : index
      %16 = vector.load %arg5[%c0_14, %c0_15] : memref<128x8xf32, #tpu.memory_space<vmem>>, vector<128x8xf32>
      tpu.vector_store %arg5[%c0_14, %c0_15], %15 {strides = array<i32>} : memref<128x8xf32, #tpu.memory_space<vmem>>, vector<128x8xf32>,
    } else {
    }
    return
  }
  func.func @transform_0(%arg0: i32, %arg1: i32) -> (i32, i32) {
    %c0_i32 = arith.constant 0 : i32
    return %arg0, %arg1 : i32, i32
  }
  func.func @transform_1(%arg0: i32, %arg1: i32) -> (i32, i32) {
    %c0_i32 = arith.constant 0 : i32
    %c0_i32_0 = arith.constant 0 : i32
    return %arg1, %c0_i32 : i32, i32
  }
  func.func @transform_2(%arg0: i32, %arg1: i32) -> (i32, i32) {
    %c0_i32 = arith.constant 0 : i32
    %c0_i32_0 = arith.constant 0 : i32
    %c0_i32_1 = arith.constant 0 : i32
    return %c0_i32, %c0_i32_0 : i32, i32
  }
  func.func @transform_3(%arg0: i32, %arg1: i32) -> (i32, i32) {
    %c0_i32 = arith.constant 0 : i32
    %c0_i32_0 = arith.constant 0 : i32
    return %arg0, %c0_i32 : i32, i32
  }
}

</mosaic_0001>

<llo_original>
// kernel: tpu_custom_call.1
$region0: #{tpu_custom_call.1}
  #allocation0 [shape = 'u32[]', space=smem, size = 0x4, offset = 0x4, fixed_abs, tag = 'smem constant byte address 0x4 - core index']
  #allocation1 [shape = 'u32[144,128]{1,0:T(1,128)}', space=vmem, size = 0x12000, scoped, tag = 'internal scratch']
  #allocation2 [shape = 'f32[128,8]{1,0:T(8,128)}', space=vmem, size = 0x10000, scoped, tag = 'scratch operand']
  %s0 = inlined_call_operand.vmem [shape: f32[128,108], index: 0, kind: input, shape index: {}]
  %s1 = inlined_call_operand.vmem [shape: f32[108,8], index: 1, kind: input, shape index: {}]
  %s2 = inlined_call_operand.vmem [shape: f32[1,8], index: 2, kind: input, shape index: {}]
  %s3 = inlined_call_operand.vmem [shape: f32[128,8], index: 3, kind: output, shape index: {}]
  %s4 = sld [smem:[#allocation0]]
  $region30: #{tpu_custom_call.1} parent=0
    _
  %s6 = ssub.s32 1, %s4
  %s7 = scalar_select 0, %s6, %s4
  // Predicated region
  $region2: #{tpu_custom_call.1} parent=0 // pred_check
    _
  $region3: #{tpu_custom_call.1} parent=0 // pred_check_branch
    %9 = sbr.rel (0) target = $region5
  $region4: #{tpu_custom_call.1} parent=0 // pred_region
    _
  $region5: #{tpu_custom_call.1} parent=0 // pred_fallthru
    _
  // Predicated region
  $region6: #{tpu_custom_call.1} parent=0 // pred_check
    _
  $region7: #{tpu_custom_call.1} parent=0 // pred_check_branch
    %11 = sbr.rel (0) target = $region9
  $region8: #{tpu_custom_call.1} parent=0 // pred_region
    _
  $region9: #{tpu_custom_call.1} parent=0 // pred_fallthru
    _
  // Predicated region
  $region10: #{tpu_custom_call.1} parent=0 // pred_check
    _
  $region11: #{tpu_custom_call.1} parent=0 // pred_check_branch
    %13 = sbr.rel (0) target = $region13
  $region12: #{tpu_custom_call.1} parent=0 // pred_region
    _
  $region13: #{tpu_custom_call.1} parent=0 // pred_fallthru
    _
  %p14 = scmp.eq.s32.totalorder 0, 0
  // Predicated region
  $region14: #{tpu_custom_call.1} parent=0 // pred_check
    %p15 = pneg %p14
  $region15: #{tpu_custom_call.1} parent=0 // pred_check_branch
    %17 = sbr.rel (%p15) target = $region17
  $region16: #{tpu_custom_call.1} parent=0 // pred_region
    %vm18 = vcmask 64512
    %19 = vst.msk [vmem:[#allocation2] sm:$0xff] %vm18, 0.0
    %20 = vst.msk [vmem:[#allocation2 + $0x8] sm:$0xff] %vm18, 0.0
    %21 = vst.msk [vmem:[#allocation2 + $0x10] sm:$0xff] %vm18, 0.0
    %22 = vst.msk [vmem:[#allocation2 + $0x18] sm:$0xff] %vm18, 0.0
    %23 = vst.msk [vmem:[#allocation2 + $0x20] sm:$0xff] %vm18, 0.0
    %24 = vst.msk [vmem:[#allocation2 + $0x28] sm:$0xff] %vm18, 0.0
    %25 = vst.msk [vmem:[#allocation2 + $0x30] sm:$0xff] %vm18, 0.0
    %26 = vst.msk [vmem:[#allocation2 + $0x38] sm:$0xff] %vm18, 0.0
    %27 = vst.msk [vmem:[#allocation2 + $0x40] sm:$0xff] %vm18, 0.0
    %28 = vst.msk [vmem:[#allocation2 + $0x48] sm:$0xff] %vm18, 0.0
    %29 = vst.msk [vmem:[#allocation2 + $0x50] sm:$0xff] %vm18, 0.0
    %30 = vst.msk [vmem:[#allocation2 + $0x58] sm:$0xff] %vm18, 0.0
    %31 = vst.msk [vmem:[#allocation2 + $0x60] sm:$0xff] %vm18, 0.0
    %32 = vst.msk [vmem:[#allocation2 + $0x68] sm:$0xff] %vm18, 0.0
    %33 = vst.msk [vmem:[#allocation2 + $0x70] sm:$0xff] %vm18, 0.0
    %34 = vst.msk [vmem:[#allocation2 + $0x78] sm:$0xff] %vm18, 0.0
  $region17: #{tpu_custom_call.1} parent=0 // pred_fallthru
    _
  %v35 = vld [vmem:[#allocation2] sm:$0xff]
  %v36 = vld [vmem:[#allocation2 + $0x8] sm:$0xff]
  %v37 = vld [vmem:[#allocation2 + $0x10] sm:$0xff]
  %v38 = vld [vmem:[#allocation2 + $0x18] sm:$0xff]
  %v39 = vld [vmem:[#allocation2 + $0x20] sm:$0xff]
  %v40 = vld [vmem:[#allocation2 + $0x28] sm:$0xff]
  %v41 = vld [vmem:[#allocation2 + $0x30] sm:$0xff]
  %v42 = vld [vmem:[#allocation2 + $0x38] sm:$0xff]
  %v43 = vld [vmem:[#allocation2 + $0x40] sm:$0xff]
  %v44 = vld [vmem:[#allocation2 + $0x48] sm:$0xff]
  %v45 = vld [vmem:[#allocation2 + $0x50] sm:$0xff]
  %v46 = vld [vmem:[#allocation2 + $0x58] sm:$0xff]
  %v47 = vld [vmem:[#allocation2 + $0x60] sm:$0xff]
  %v48 = vld [vmem:[#allocation2 + $0x68] sm:$0xff]
  %v49 = vld [vmem:[#allocation2 + $0x70] sm:$0xff]
  %v50 = vld [vmem:[#allocation2 + $0x78] sm:$0xff]
  %v51 = vld [vmem:[%s0] sm:$0xff]
  %v52 = vld [vmem:[%s0 + $0x8] sm:$0xff]
  %v53 = vld [vmem:[%s0 + $0x10] sm:$0xff]
  %v54 = vld [vmem:[%s0 + $0x18] sm:$0xff]
  %v55 = vld [vmem:[%s0 + $0x20] sm:$0xff]
  %v56 = vld [vmem:[%s0 + $0x28] sm:$0xff]
  %v57 = vld [vmem:[%s0 + $0x30] sm:$0xff]
  %v58 = vld [vmem:[%s0 + $0x38] sm:$0xff]
  %v59 = vld [vmem:[%s0 + $0x40] sm:$0xff]
  %v60 = vld [vmem:[%s0 + $0x48] sm:$0xff]
  %v61 = vld [vmem:[%s0 + $0x50] sm:$0xff]
  %v62 = vld [vmem:[%s0 + $0x58] sm:$0xff]
  %v63 = vld [vmem:[%s0 + $0x60] sm:$0xff]
  %v64 = vld [vmem:[%s0 + $0x68] sm:$0xff]
  %v65 = vld [vmem:[%s0 + $0x70] sm:$0xff]
  %v66 = vld [vmem:[%s0 + $0x78] sm:$0xff]
  %v67 = vld [vmem:[%s1] sm:$0xff]
  %v68 = vld [vmem:[%s1 + $0x8] sm:$0xff]
  %v69 = vld [vmem:[%s1 + $0x10] sm:$0xff]
  %v70 = vld [vmem:[%s1 + $0x18] sm:$0xff]
  %v71 = vld [vmem:[%s1 + $0x20] sm:$0xff]
  %v72 = vld [vmem:[%s1 + $0x28] sm:$0xff]
  %v73 = vld [vmem:[%s1 + $0x30] sm:$0xff]
  %v74 = vld [vmem:[%s1 + $0x38] sm:$0xff]
  %v75 = vld [vmem:[%s1 + $0x40] sm:$0xff]
  %v76 = vld [vmem:[%s1 + $0x48] sm:$0xff]
  %v77 = vld [vmem:[%s1 + $0x50] sm:$0xff]
  %v78 = vld [vmem:[%s1 + $0x58] sm:$0xff]
  %v79 = vld [vmem:[%s1 + $0x60] sm:$0xff]
  %v80 = vld [vmem:[%s1 + $0x68] sm:$0xf]
  %vm81 = vcmask 883712
  %v83 = vsel %vm81, %v51, 0
  %v86 = vsel %vm81, %v52, 0
  %v89 = vsel %vm81, %v53, 0
  %v92 = vsel %vm81, %v54, 0
  %v95 = vsel %vm81, %v55, 0
  %v98 = vsel %vm81, %v56, 0
  %v101 = vsel %vm81, %v57, 0
  %v104 = vsel %vm81, %v58, 0
  %v107 = vsel %vm81, %v59, 0
  %v110 = vsel %vm81, %v60, 0
  %v113 = vsel %vm81, %v61, 0
  %v116 = vsel %vm81, %v62, 0
  %v119 = vsel %vm81, %v63, 0
  %v122 = vsel %vm81, %v64, 0
  %v125 = vsel %vm81, %v65, 0
  %v128 = vsel %vm81, %v66, 0
  %vm130 = vcmask 1043456
  %v132 = vsel %vm130, %v80, 0
  %134 = vmatprep.subr.mxu0 0.0
  %135 = vmatpush1.msra.mxu0 %v67
  %136 = vmatprep.subr.mxu0 0.0
  %137 = vmatpush1.msra.mxu0 %v68
  %138 = vmatprep.subr.mxu0 0.0
  %139 = vmatpush1.msra.mxu0 %v69
  %140 = vmatprep.subr.mxu0 0.0
  %141 = vmatpush1.msra.mxu0 %v70
  %142 = vmatprep.subr.mxu0 0.0
  %143 = vmatpush1.msra.mxu0 %v71
  %144 = vmatprep.subr.mxu0 0.0
  %145 = vmatpush1.msra.mxu0 %v72
  %146 = vmatprep.subr.mxu0 0.0
  %147 = vmatpush1.msra.mxu0 %v73
  %148 = vmatprep.subr.mxu0 0.0
  %149 = vmatpush1.msra.mxu0 %v74
  %150 = vmatprep.subr.mxu0 0.0
  %151 = vmatpush1.msra.mxu0 %v75
  %152 = vmatprep.subr.mxu0 0.0
  %153 = vmatpush1.msra.mxu0 %v76
  %154 = vmatprep.subr.mxu0 0.0
  %155 = vmatpush1.msra.mxu0 %v77
  %156 = vmatprep.subr.mxu0 0.0
  %157 = vmatpush1.msra.mxu0 %v78
  %158 = vmatprep.subr.mxu0 0.0
  %159 = vmatpush1.msra.mxu0 %v79
  %160 = vmatprep.subr.mxu0 0.0
  %161 = vmatpush1.msra.mxu0 %v132
  %162 = vmatprep.subr.mxu0 0.0
  %163 = vmatpush1.msra.mxu0 0.0
  %164 = vmatprep.subr.mxu0 0.0
  %165 = vmatpush1.msra.mxu0 0.0
  %166 = vmatprep.subr.mxu0 0.0
  %167 = vmatpush1.msra.mxu0 0.0
  %168 = vmatprep.subr.mxu0 0.0
  %169 = vmatpush1.msra.mxu0 0.0
  %170 = vmatprep.subr.mxu0 0.0
  %171 = vmatpush1.msra.mxu0 0.0
  %172 = vmatprep.subr.mxu0 0.0
  %173 = vmatpush1.msra.mxu0 0.0
  %174 = vmatprep.subr.mxu0 0.0
  %175 = vmatpush1.msra.mxu0 0.0
  %176 = vmatprep.subr.mxu0 0.0
  %177 = vmatpush1.msra.mxu0 0.0
  %178 = vmatprep.subr.mxu0 0.0
  %179 = vmatpush1.msra.mxu0 0.0
  %180 = vmatprep.subr.mxu0 0.0
  %181 = vmatpush1.msra.mxu0 0.0
  %182 = vmatprep.subr.mxu0 0.0
  %183 = vmatpush1.msra.mxu0 0.0
  %184 = vmatprep.subr.mxu0 0.0
  %185 = vmatpush1.msra.mxu0 0.0
  %186 = vmatprep.subr.mxu0 0.0
  %187 = vmatpush1.msra.mxu0 0.0
  %188 = vmatprep.subr.mxu0 0.0
  %189 = vmatpush1.msra.mxu0 0.0
  %190 = vmatprep.subr.mxu0 0.0
  %191 = vmatpush1.msra.mxu0 0.0
  %192 = vmatprep.subr.mxu0 0.0
  %193 = vmatpush1.msra.mxu0 0.0
  %194 = vmatprep.subr.mxu0 0.0
  %195 = vmatpush1.msra.mxu0 0.0
  %196 = vmatprep.subr.mxu0 0.0
  %197 = vmatpush1.msra.mxu0 0.0
  %198 = vmatprep.mubr.f32.mxu0 0.0
  %199 = vmatmul.mubr.f32.gmra.mrb[0].mxu0 %v83
  %v200 = vpop.f32.mrb[0].mxu0
  %v201 = vadd.f32 0.0, %v200
  %v202 = vpop.f32.mrb[0].mxu0
  %203 = vmatprep.mubr.f32.mxu0 0.0
  %204 = vmatmul.mubr.f32.gmra.mrb[0].mxu0 %v86
  %v205 = vpop.f32.mrb[0].mxu0
  %v206 = vadd.f32 0.0, %v205
  %v207 = vpop.f32.mrb[0].mxu0
  %208 = vmatprep.mubr.f32.mxu0 0.0
  %209 = vmatmul.mubr.f32.gmra.mrb[0].mxu0 %v89
  %v210 = vpop.f32.mrb[0].mxu0
  %v211 = vadd.f32 0.0, %v210
  %v212 = vpop.f32.mrb[0].mxu0
  %213 = vmatprep.mubr.f32.mxu0 0.0
  %214 = vmatmul.mubr.f32.gmra.mrb[0].mxu0 %v92
  %v215 = vpop.f32.mrb[0].mxu0
  %v216 = vadd.f32 0.0, %v215
  %v217 = vpop.f32.mrb[0].mxu0
  %218 = vmatprep.mubr.f32.mxu0 0.0
  %219 = vmatmul.mubr.f32.gmra.mrb[0].mxu0 %v95
  %v220 = vpop.f32.mrb[0].mxu0
  %v221 = vadd.f32 0.0, %v220
  %v222 = vpop.f32.mrb[0].mxu0
  %223 = vmatprep.mubr.f32.mxu0 0.0
  %224 = vmatmul.mubr.f32.gmra.mrb[0].mxu0 %v98
  %v225 = vpop.f32.mrb[0].mxu0
  %v226 = vadd.f32 0.0, %v225
  %v227 = vpop.f32.mrb[0].mxu0
  %228 = vmatprep.mubr.f32.mxu0 0.0
  %229 = vmatmul.mubr.f32.gmra.mrb[0].mxu0 %v101
  %v230 = vpop.f32.mrb[0].mxu0
  %v231 = vadd.f32 0.0, %v230
  %v232 = vpop.f32.mrb[0].mxu0
  %233 = vmatprep.mubr.f32.mxu0 0.0
  %234 = vmatmul.mubr.f32.gmra.mrb[0].mxu0 %v104
  %v235 = vpop.f32.mrb[0].mxu0
  %v236 = vadd.f32 0.0, %v235
  %v237 = vpop.f32.mrb[0].mxu0
  %238 = vmatprep.mubr.f32.mxu0 0.0
  %239 = vmatmul.mubr.f32.gmra.mrb[0].mxu0 %v107
  %v240 = vpop.f32.mrb[0].mxu0
  %v241 = vadd.f32 0.0, %v240
  %v242 = vpop.f32.mrb[0].mxu0
  %243 = vmatprep.mubr.f32.mxu0 0.0
  %244 = vmatmul.mubr.f32.gmra.mrb[0].mxu0 %v110
  %v245 = vpop.f32.mrb[0].mxu0
  %v246 = vadd.f32 0.0, %v245
  %v247 = vpop.f32.mrb[0].mxu0
  %248 = vmatprep.mubr.f32.mxu0 0.0
  %249 = vmatmul.mubr.f32.gmra.mrb[0].mxu0 %v113
  %v250 = vpop.f32.mrb[0].mxu0
  %v251 = vadd.f32 0.0, %v250
  %v252 = vpop.f32.mrb[0].mxu0
  %253 = vmatprep.mubr.f32.mxu0 0.0
  %254 = vmatmul.mubr.f32.gmra.mrb[0].mxu0 %v116
  %v255 = vpop.f32.mrb[0].mxu0
  %v256 = vadd.f32 0.0, %v255
  %v257 = vpop.f32.mrb[0].mxu0
  %258 = vmatprep.mubr.f32.mxu0 0.0
  %259 = vmatmul.mubr.f32.gmra.mrb[0].mxu0 %v119
  %v260 = vpop.f32.mrb[0].mxu0
  %v261 = vadd.f32 0.0, %v260
  %v262 = vpop.f32.mrb[0].mxu0
  %263 = vmatprep.mubr.f32.mxu0 0.0
  %264 = vmatmul.mubr.f32.gmra.mrb[0].mxu0 %v122
  %v265 = vpop.f32.mrb[0].mxu0
  %v266 = vadd.f32 0.0, %v265
  %v267 = vpop.f32.mrb[0].mxu0
  %268 = vmatprep.mubr.f32.mxu0 0.0
  %269 = vmatmul.mubr.f32.gmra.mrb[0].mxu0 %v125
  %v270 = vpop.f32.mrb[0].mxu0
  %v271 = vadd.f32 0.0, %v270
  %v272 = vpop.f32.mrb[0].mxu0
  %273 = vmatprep.mubr.f32.mxu0 0.0
  %274 = vmatmul.mubr.f32.gmra.mrb[0].mxu0 %v128
  %v275 = vpop.f32.mrb[0].mxu0
  %v276 = vadd.f32 0.0, %v275
  %v277 = vpop.f32.mrb[0].mxu0
  %278 = vdwg.mxu0
  %v279 = vadd.f32 %v35, %v201
  %v280 = vadd.f32 %v36, %v206
  %v281 = vadd.f32 %v37, %v211
  %v282 = vadd.f32 %v38, %v216
  %v283 = vadd.f32 %v39, %v221
  %v284 = vadd.f32 %v40, %v226
  %v285 = vadd.f32 %v41, %v231
  %v286 = vadd.f32 %v42, %v236
  %v287 = vadd.f32 %v43, %v241
  %v288 = vadd.f32 %v44, %v246
  %v289 = vadd.f32 %v45, %v251
  %v290 = vadd.f32 %v46, %v256
  %v291 = vadd.f32 %v47, %v261
  %v292 = vadd.f32 %v48, %v266
  %v293 = vadd.f32 %v49, %v271
  %v294 = vadd.f32 %v50, %v276
  %vm295 = vcmask 64512
  %296 = vst.msk [vmem:[#allocation2] sm:$0xff] %vm295, %v279
  %297 = vst.msk [vmem:[#allocation2 + $0x8] sm:$0xff] %vm295, %v280
  %298 = vst.msk [vmem:[#allocation2 + $0x10] sm:$0xff] %vm295, %v281
  %299 = vst.msk [vmem:[#allocation2 + $0x18] sm:$0xff] %vm295, %v282
  %300 = vst.msk [vmem:[#allocation2 + $0x20] sm:$0xff] %vm295, %v283
  %301 = vst.msk [vmem:[#allocation2 + $0x28] sm:$0xff] %vm295, %v284
  %302 = vst.msk [vmem:[#allocation2 + $0x30] sm:$0xff] %vm295, %v285
  %303 = vst.msk [vmem:[#allocation2 + $0x38] sm:$0xff] %vm295, %v286
  %304 = vst.msk [vmem:[#allocation2 + $0x40] sm:$0xff] %vm295, %v287
  %305 = vst.msk [vmem:[#allocation2 + $0x48] sm:$0xff] %vm295, %v288
  %306 = vst.msk [vmem:[#allocation2 + $0x50] sm:$0xff] %vm295, %v289
  %307 = vst.msk [vmem:[#allocation2 + $0x58] sm:$0xff] %vm295, %v290
  %308 = vst.msk [vmem:[#allocation2 + $0x60] sm:$0xff] %vm295, %v291
  %309 = vst.msk [vmem:[#allocation2 + $0x68] sm:$0xff] %vm295, %v292
  %310 = vst.msk [vmem:[#allocation2 + $0x70] sm:$0xff] %vm295, %v293
  %311 = vst.msk [vmem:[#allocation2 + $0x78] sm:$0xff] %vm295, %v294
  // Predicated region
  $region18: #{tpu_custom_call.1} parent=0 // pred_check
    %p312 = pneg %p14
  $region19: #{tpu_custom_call.1} parent=0 // pred_check_branch
    %314 = sbr.rel (%p312) target = $region21
  $region20: #{tpu_custom_call.1} parent=0 // pred_region
    %v315 = vld [vmem:[#allocation2] sm:$0xff]
    %v316 = vld [vmem:[#allocation2 + $0x8] sm:$0xff]
    %v317 = vld [vmem:[#allocation2 + $0x10] sm:$0xff]
    %v318 = vld [vmem:[#allocation2 + $0x18] sm:$0xff]
    %v319 = vld [vmem:[#allocation2 + $0x20] sm:$0xff]
    %v320 = vld [vmem:[#allocation2 + $0x28] sm:$0xff]
    %v321 = vld [vmem:[#allocation2 + $0x30] sm:$0xff]
    %v322 = vld [vmem:[#allocation2 + $0x38] sm:$0xff]
    %v323 = vld [vmem:[#allocation2 + $0x40] sm:$0xff]
    %v324 = vld [vmem:[#allocation2 + $0x48] sm:$0xff]
    %v325 = vld [vmem:[#allocation2 + $0x50] sm:$0xff]
    %v326 = vld [vmem:[#allocation2 + $0x58] sm:$0xff]
    %v327 = vld [vmem:[#allocation2 + $0x60] sm:$0xff]
    %v328 = vld [vmem:[#allocation2 + $0x68] sm:$0xff]
    %v329 = vld [vmem:[#allocation2 + $0x70] sm:$0xff]
    %v330 = vld [vmem:[#allocation2 + $0x78] sm:$0xff]
    %v331 = vld [vmem:[%s2] sm:$0x1]
    %v333 = vlaneseq
    %v334 = vshrl.u32 %v333, 7
    %v335 = vsub.s32 0, %v334
    %v336 = vrot.slane %v331, %v335
    %v338 = vadd.f32 %v315, %v336
    %v339 = vadd.f32 %v316, %v336
    %v340 = vadd.f32 %v317, %v336
    %v341 = vadd.f32 %v318, %v336
    %v342 = vadd.f32 %v319, %v336
    %v343 = vadd.f32 %v320, %v336
    %v344 = vadd.f32 %v321, %v336
    %v345 = vadd.f32 %v322, %v336
    %v346 = vadd.f32 %v323, %v336
    %v347 = vadd.f32 %v324, %v336
    %v348 = vadd.f32 %v325, %v336
    %v349 = vadd.f32 %v326, %v336
    %v350 = vadd.f32 %v327, %v336
    %v351 = vadd.f32 %v328, %v336
    %v352 = vadd.f32 %v329, %v336
    %v353 = vadd.f32 %v330, %v336
    %354 = vst.msk [vmem:[%s3] sm:$0xff] %vm295, %v338
    %355 = vst.msk [vmem:[%s3 + $0x8] sm:$0xff] %vm295, %v339
    %356 = vst.msk [vmem:[%s3 + $0x10] sm:$0xff] %vm295, %v340
    %357 = vst.msk [vmem:[%s3 + $0x18] sm:$0xff] %vm295, %v341
    %358 = vst.msk [vmem:[%s3 + $0x20] sm:$0xff] %vm295, %v342
    %359 = vst.msk [vmem:[%s3 + $0x28] sm:$0xff] %vm295, %v343
    %360 = vst.msk [vmem:[%s3 + $0x30] sm:$0xff] %vm295, %v344
    %361 = vst.msk [vmem:[%s3 + $0x38] sm:$0xff] %vm295, %v345
    %362 = vst.msk [vmem:[%s3 + $0x40] sm:$0xff] %vm295, %v346
    %363 = vst.msk [vmem:[%s3 + $0x48] sm:$0xff] %vm295, %v347
    %364 = vst.msk [vmem:[%s3 + $0x50] sm:$0xff] %vm295, %v348
    %365 = vst.msk [vmem:[%s3 + $0x58] sm:$0xff] %vm295, %v349
    %366 = vst.msk [vmem:[%s3 + $0x60] sm:$0xff] %vm295, %v350
    %367 = vst.msk [vmem:[%s3 + $0x68] sm:$0xff] %vm295, %v351
    %368 = vst.msk [vmem:[%s3 + $0x70] sm:$0xff] %vm295, %v352
    %369 = vst.msk [vmem:[%s3 + $0x78] sm:$0xff] %vm295, %v353
  $region21: #{tpu_custom_call.1} parent=0 // pred_fallthru
    _
  // Predicated region
  $region22: #{tpu_custom_call.1} parent=0 // pred_check
    _
  $region23: #{tpu_custom_call.1} parent=0 // pred_check_branch
    %371 = sbr.rel (0) target = $region25
  $region24: #{tpu_custom_call.1} parent=0 // pred_region
    _
  $region25: #{tpu_custom_call.1} parent=0 // pred_fallthru
    _
  // Predicated region
  $region26: #{tpu_custom_call.1} parent=0 // pred_check
    _
  $region27: #{tpu_custom_call.1} parent=0 // pred_check_branch
    %373 = sbr.rel (0) target = $region29
  $region28: #{tpu_custom_call.1} parent=0 // pred_region
    _
  $region29: #{tpu_custom_call.1} parent=0 // pred_fallthru
    _

</llo_original>
